<compile_context>
chip_gen: v7x
topology: tpu7x:2x2x1
jax: 0.10.0
libtpu: 0.0.40
codegen_flags: <defaults>
</compile_context>

<pallas_src>
import jax
import jax.numpy as jnp
from jax.experimental import pallas as pl
from jax.experimental.pallas import tpu as pltpu


def _round_up(x, m):
    return (x + m - 1) // m * m


def _pick_tile(n_pad, t_max):
    """Largest multiple of 128 that divides n_pad and is <= t_max (min 128)."""
    units = n_pad // 128
    best = 1
    for d in range(1, units + 1):
        if units % d == 0 and 128 * d <= t_max:
            best = d
    return 128 * best


# ---------------------------------------------------------------------------
# Kernel 1: per-node projection for layer 1,   P1 = norm_out * (X @ W1)
# ---------------------------------------------------------------------------
def _project1_kernel(x_ref, nout_ref, w1_ref, p1_ref):
    xw = jnp.dot(x_ref[...], w1_ref[...], preferred_element_type=jnp.float32)  # [tm, H]
    p1_ref[...] = (nout_ref[...] * xw).astype(p1_ref.dtype)


# ---------------------------------------------------------------------------
# Kernel 2: layer-1 aggregation + bias + relu, pre-scaled for layer 2
#   P2 = norm_out * relu(norm_in * (A @ P1) + b1)
# ---------------------------------------------------------------------------
def _make_agg1_kernel(resident, tk):
    def kernel(a_ref, p1_ref, nin_ref, nout_ref, b1_ref, p2_ref, acc_ref):
        k = pl.program_id(1)

        @pl.when(k == 0)
        def _():
            acc_ref[...] = jnp.zeros_like(acc_ref)

        if resident:
            start = pl.multiple_of(k * tk, tk)
            p1 = p1_ref[pl.ds(start, tk), :]          # slice VMEM-resident P1
        else:
            p1 = p1_ref[...]
        a = a_ref[...]
        if a.dtype != p1.dtype:                       # f32 fallback path only
            a = a.astype(p1.dtype)
        # bf16 x bf16 MXU matmul, f32 accumulation.
        acc_ref[...] += jnp.dot(a, p1, preferred_element_type=jnp.float32)

        @pl.when(k == pl.num_programs(1) - 1)
        def _():
            h = jnp.maximum(nin_ref[...] * acc_ref[...] + b1_ref[...], 0.0)
            # dropout(p=False) is the identity; nothing to do.
            p2_ref[...] = (nout_ref[...] * h).astype(p2_ref.dtype)

    return kernel


# ---------------------------------------------------------------------------
# Kernel 3: layer-2 aggregation (lane width H), class projection, bias,
#           log_softmax.   out = log_softmax((norm_in * (A @ P2)) @ W2 + b2)
# ---------------------------------------------------------------------------
def _make_agg2_kernel(resident, tk):
    def kernel(a_ref, p2_ref, nin_ref, w2_ref, b2_ref, o_ref, acc_ref):
        k = pl.program_id(1)

        @pl.when(k == 0)
        def _():
            acc_ref[...] = jnp.zeros_like(acc_ref)

        if resident:
            start = pl.multiple_of(k * tk, tk)
            p2 = p2_ref[pl.ds(start, tk), :]
        else:
            p2 = p2_ref[...]
        a = a_ref[...]
        if a.dtype != p2.dtype:
            a = a.astype(p2.dtype)
        acc_ref[...] += jnp.dot(a, p2, preferred_element_type=jnp.float32)

        @pl.when(k == pl.num_programs(1) - 1)
        def _():
            g = nin_ref[...] * acc_ref[...]                                    # [tm, H]
            z = jnp.dot(g, w2_ref[...], preferred_element_type=jnp.float32) + b2_ref[...]
            m = jnp.max(z, axis=1, keepdims=True)
            lse = jnp.log(jnp.sum(jnp.exp(z - m), axis=1, keepdims=True)) + m
            o_ref[...] = (z - lse).astype(o_ref.dtype)

    return kernel


def gcn_forward(adj, x, w1, b1, w2, b2, *,
                tm_max=512, tk_max=512,
                activation_dtype=jnp.bfloat16,
                resident_bytes_max=8 * 1024 * 1024,
                vmem_limit_bytes=48 * 1024 * 1024):
    """GCN forward.  adj must be a 0/1 (unweighted) adjacency.

    activation_dtype=bf16 keeps the MXU on its fast bf16 path and halves the
    P1/P2 HBM streams; pass jnp.float32 to reproduce the reference bit-tightly.
    """
    n, nfeat = x.shape
    nhid = w1.shape[1]
    nclass = w2.shape[1]

    # --- prologue (one pass over A) -------------------------------------------
    # bf16 is exact for 0/1 adjacencies; degree sums use f32 accumulation.
    # TODO(synk): for weighted (non-0/1) adjacencies keep adj in f32 here.
    adj_bf16 = adj.astype(jnp.bfloat16)
    deg_in = jnp.sum(adj_bf16, axis=1, dtype=jnp.float32).reshape(n, 1)
    deg_out = jnp.sum(adj_bf16, axis=0, dtype=jnp.float32).reshape(n, 1)
    norm_in = jax.lax.rsqrt(jnp.maximum(deg_in, 1.0))     # [N, 1]
    norm_out = jax.lax.rsqrt(jnp.maximum(deg_out, 1.0))   # [N, 1]

    x = x.astype(jnp.float32)

    # --- padding / tiling: pad N only to a lane multiple (128), pick tiles as
    #     divisors of n_pad so there is no further padding waste ----------------
    n_pad = _round_up(n, 128)
    if n_pad != n:
        pad = n_pad - n
        adj_bf16 = jnp.pad(adj_bf16, ((0, pad), (0, pad)))
        x = jnp.pad(x, ((0, pad), (0, 0)))
        norm_in = jnp.pad(norm_in, ((0, pad), (0, 0)))
        norm_out = jnp.pad(norm_out, ((0, pad), (0, 0)))

    tk = _pick_tile(n_pad, tk_max)       # A-column (reduction) tile
    tm = _pick_tile(n_pad, tm_max)       # node-row tile
    row_grid = n_pad // tm
    k_grid = n_pad // tk

    act_bytes = jnp.dtype(activation_dtype).itemsize
    resident = n_pad * nhid * act_bytes <= resident_bytes_max

    cparams_1d = pltpu.CompilerParams(
        dimension_semantics=("parallel",),
        vmem_limit_bytes=vmem_limit_bytes,
    )
    cparams_2d = pltpu.CompilerParams(
        dimension_semantics=("parallel", "arbitrary"),
        vmem_limit_bytes=vmem_limit_bytes,
    )

    if resident:
        # Whole P1/P2 stays in VMEM for the entire grid (constant index_map).
        p1_spec = pl.BlockSpec((n_pad, nhid), lambda i, k: (0, 0))
        p2_spec = pl.BlockSpec((n_pad, nhid), lambda i, k: (0, 0))
    else:
        p1_spec = pl.BlockSpec((tk, nhid), lambda i, k: (k, 0))
        p2_spec = pl.BlockSpec((tk, nhid), lambda i, k: (k, 0))

    # --- P1 = norm_out * (X @ W1) ----------------------------------------------
    p1 = pl.pallas_call(
        _project1_kernel,
        out_shape=jax.ShapeDtypeStruct((n_pad, nhid), activation_dtype),
        grid_spec=pltpu.PrefetchScalarGridSpec(
            num_scalar_prefetch=0,
            grid=(row_grid,),
            in_specs=[
                pl.BlockSpec((tm, nfeat), lambda i: (i, 0)),       # X rows
                pl.BlockSpec((tm, 1), lambda i: (i, 0)),           # norm_out rows
                pl.BlockSpec((nfeat, nhid), lambda i: (0, 0)),     # W1 (resident)
            ],
            out_specs=pl.BlockSpec((tm, nhid), lambda i: (i, 0)),
        ),
        compiler_params=cparams_1d,
    )(x, norm_out, w1)

    # --- P2 = norm_out * relu(norm_in * (A @ P1) + b1) --------------------------
    p2 = pl.pallas_call(
        _make_agg1_kernel(resident, tk),
        out_shape=jax.ShapeDtypeStruct((n_pad, nhid), activation_dtype),
        grid_spec=pltpu.PrefetchScalarGridSpec(
            num_scalar_prefetch=0,
            grid=(row_grid, k_grid),
            in_specs=[
                pl.BlockSpec((tm, tk), lambda i, k: (i, k)),       # A tile (bf16)
                p1_spec,                                           # P1 (bf16)
                pl.BlockSpec((tm, 1), lambda i, k: (i, 0)),        # norm_in rows
                pl.BlockSpec((tm, 1), lambda i, k: (i, 0)),        # norm_out rows
                pl.BlockSpec((1, nhid), lambda i, k: (0, 0)),      # b1 (resident)
            ],
            out_specs=pl.BlockSpec((tm, nhid), lambda i, k: (i, 0)),
            scratch_shapes=[pltpu.VMEM((tm, nhid), jnp.float32)],
        ),
        compiler_params=cparams_2d,
    )(adj_bf16, p1, norm_in, norm_out, b1)

    # --- out = log_softmax((norm_in * (A @ P2)) @ W2 + b2) ------------------------
    out = pl.pallas_call(
        _make_agg2_kernel(resident, tk),
        out_shape=jax.ShapeDtypeStruct((n_pad, nclass), jnp.float32),
        grid_spec=pltpu.PrefetchScalarGridSpec(
            num_scalar_prefetch=0,
            grid=(row_grid, k_grid),
            in_specs=[
                pl.BlockSpec((tm, tk), lambda i, k: (i, k)),        # A tile (bf16)
                p2_spec,                                            # P2 (bf16)
                pl.BlockSpec((tm, 1), lambda i, k: (i, 0)),         # norm_in rows
                pl.BlockSpec((nhid, nclass), lambda i, k: (0, 0)),  # W2 (resident)
                pl.BlockSpec((1, nclass), lambda i, k: (0, 0)),     # b2 (resident)
            ],
            out_specs=pl.BlockSpec((tm, nclass), lambda i, k: (i, 0)),
            scratch_shapes=[pltpu.VMEM((tm, nhid), jnp.float32)],
        ),
        compiler_params=cparams_2d,
    )(adj_bf16, p2, norm_in, w2, b2)

    return out[:n]


def gcn_reference(adj, x, w1, b1, w2, b2):
    adj = adj.astype(jnp.float32)
    deg_in = jnp.maximum(adj.sum(axis=1, keepdims=True), 1.0)
    deg_out = jnp.maximum(adj.sum(axis=0, keepdims=True), 1.0)
    a_hat = adj / jnp.sqrt(deg_in) / jnp.sqrt(deg_out)
    h = jax.nn.relu(a_hat @ (x @ w1) + b1)
    z = a_hat @ (h @ w2) + b2
    return jax.nn.log_softmax(z, axis=1)


if __name__ == "__main__":
    key = jax.random.PRNGKey(0)
    N, NFEAT, NHID, NCLASS = 16, 8, 32, 2

    k_adj, k_x, k_w1, k_w2 = jax.random.split(key, 4)

    # Deterministic synthetic graph: symmetric 0/1 adjacency, no self-loops.
    a_rand = jax.random.uniform(k_adj, (N, N))
    adj = (a_rand + a_rand.T > 1.0).astype(jnp.float32)
    adj = adj * (1.0 - jnp.eye(N, dtype=jnp.float32))

    x = jax.random.normal(k_x, (N, NFEAT), dtype=jnp.float32)

    # Xavier-uniform-ish deterministic weights; zero biases (matches GraphConv init).
    lim1 = (6.0 / (NFEAT + NHID)) ** 0.5
    lim2 = (6.0 / (NHID + NCLASS)) ** 0.5
    w1 = jax.random.uniform(k_w1, (NFEAT, NHID), minval=-lim1, maxval=lim1, dtype=jnp.float32)
    w2 = jax.random.uniform(k_w2, (NHID, NCLASS), minval=-lim2, maxval=lim2, dtype=jnp.float32)
    b1 = jnp.zeros((1, NHID), dtype=jnp.float32)
    b2 = jnp.zeros((1, NCLASS), dtype=jnp.float32)

    ref = gcn_reference(adj, x, w1, b1, w2, b2)

    # Fast path: bf16 A + bf16 activations on the MXU (intermediates rounded to
    # bf16 -> loosened tolerance).
    out = gcn_forward(adj, x, w1, b1, w2, b2)
    out = jax.block_until_ready(out)
    assert out.shape == (N, NCLASS)
    assert jnp.allclose(out, ref, atol=2e-2, rtol=2e-2), float(jnp.max(jnp.abs(out - ref)))

    # Exact path: f32 activations reproduce the reference to tight tolerance.
    out_f32 = gcn_forward(adj, x, w1, b1, w2, b2, activation_dtype=jnp.float32)
    out_f32 = jax.block_until_ready(out_f32)
    assert jnp.allclose(out_f32, ref, atol=1e-4, rtol=1e-4), float(jnp.max(jnp.abs(out_f32 - ref)))

    print("KERNEL_OK")
</pallas_src>

<mosaic_0001>
module attributes {stable_mosaic.version = 11 : i64} {
  func.func @_project1_kernel(%arg0: i32, %arg1: memref<128x8xf32, #tpu.memory_space<vmem>>, %arg2: memref<128x1xf32, #tpu.memory_space<vmem>>, %arg3: memref<8x32xf32, #tpu.memory_space<vmem>>, %arg4: memref<128x32xbf16, #tpu.memory_space<vmem>>) attributes {dimension_semantics = [#tpu.dimension_semantics<parallel>], iteration_bounds = array<i64: 1>, scalar_prefetch = 0 : i64, scratch_operands = 0 : i64, tpu.core_type = #tpu.core_type<tc>, window_params = [{transform_indices = @transform_0, window_bounds = array<i64: 128, 8>}, {transform_indices = @transform_1, window_bounds = array<i64: 128, 1>}, {pipeline_mode = #tpu.pipeline_mode<synchronous>, transform_indices = @transform_2, window_bounds = array<i64: 8, 32>}, {transform_indices = @transform_3, window_bounds = array<i64: 128, 32>}]} {
    %c0 = arith.constant 0 : index
    %c0_0 = arith.constant 0 : index
    %0 = vector.load %arg1[%c0, %c0_0] : memref<128x8xf32, #tpu.memory_space<vmem>>, vector<128x8xf32>
    %c0_1 = arith.constant 0 : index
    %c0_2 = arith.constant 0 : index
    %1 = vector.load %arg3[%c0_1, %c0_2] : memref<8x32xf32, #tpu.memory_space<vmem>>, vector<8x32xf32>
    %cst = arith.constant dense<0.000000e+00> : vector<128x32xf32>
    %2 = tpu.matmul %0, %1, %cst {dimension_numbers = #tpu.dot_dimension_numbers<[1], [0], [0], [1], [0, 0, 1, 1], [], []>} : vector<128x8xf32>, vector<8x32xf32>, vector<128x32xf32> -> vector<128x32xf32>
    %c0_3 = arith.constant 0 : index
    %c0_4 = arith.constant 0 : index
    %3 = vector.load %arg2[%c0_3, %c0_4] : memref<128x1xf32, #tpu.memory_space<vmem>>, vector<128x1xf32>
    %4 = vector.broadcast %3 : vector<128x1xf32> to vector<128x32xf32>
    %5 = arith.mulf %4, %2 : vector<128x32xf32>
    %6 = arith.truncf %5 : vector<128x32xf32> to vector<128x32xbf16>
    %c0_5 = arith.constant 0 : index
    %c0_6 = arith.constant 0 : index
    %7 = vector.load %arg4[%c0_5, %c0_6] : memref<128x32xbf16, #tpu.memory_space<vmem>>, vector<128x32xbf16>
    tpu.vector_store %arg4[%c0_5, %c0_6], %6 {strides = array<i32>} : memref<128x32xbf16, #tpu.memory_space<vmem>>, vector<128x32xbf16>,
    return
  }
  func.func @transform_0(%arg0: i32) -> (i32, i32) {
    %c0_i32 = arith.constant 0 : i32
    %c0_i32_0 = arith.constant 0 : i32
    return %arg0, %c0_i32 : i32, i32
  }
  func.func @transform_1(%arg0: i32) -> (i32, i32) {
    %c0_i32 = arith.constant 0 : i32
    %c0_i32_0 = arith.constant 0 : i32
    return %arg0, %c0_i32 : i32, i32
  }
  func.func @transform_2(%arg0: i32) -> (i32, i32) {
    %c0_i32 = arith.constant 0 : i32
    %c0_i32_0 = arith.constant 0 : i32
    %c0_i32_1 = arith.constant 0 : i32
    return %c0_i32, %c0_i32_0 : i32, i32
  }
  func.func @transform_3(%arg0: i32) -> (i32, i32) {
    %c0_i32 = arith.constant 0 : i32
    %c0_i32_0 = arith.constant 0 : i32
    return %arg0, %c0_i32 : i32, i32
  }
}

</mosaic_0001>

<llo_original>
// kernel: tpu_custom_call.1
$region0: #{tpu_custom_call.1}
  #allocation0 [shape = 'u32[]', space=smem, size = 0x4, offset = 0x4, fixed_abs, tag = 'smem constant byte address 0x4 - core index']
  #allocation1 [shape = 'u32[144,128]{1,0:T(1,128)}', space=vmem, size = 0x12000, scoped, tag = 'internal scratch']
  %s0 = inlined_call_operand.vmem [shape: f32[128,8], index: 0, kind: input, shape index: {}]
  %s1 = inlined_call_operand.vmem [shape: f32[128,1], index: 1, kind: input, shape index: {}]
  %s2 = inlined_call_operand.vmem [shape: f32[8,32], index: 2, kind: input, shape index: {}]
  %s3 = inlined_call_operand.vmem [shape: bf16[128,32], index: 3, kind: output, shape index: {}]
  %s4 = sld [smem:[#allocation0]]
  $region22: #{tpu_custom_call.1} parent=0
    _
  %s6 = ssub.s32 1, %s4
  %s7 = scalar_select 0, %s6, %s4
  // Predicated region
  $region2: #{tpu_custom_call.1} parent=0 // pred_check
    _
  $region3: #{tpu_custom_call.1} parent=0 // pred_check_branch
    %9 = sbr.rel (0) target = $region5
  $region4: #{tpu_custom_call.1} parent=0 // pred_region
    _
  $region5: #{tpu_custom_call.1} parent=0 // pred_fallthru
    _
  // Predicated region
  $region6: #{tpu_custom_call.1} parent=0 // pred_check
    _
  $region7: #{tpu_custom_call.1} parent=0 // pred_check_branch
    %11 = sbr.rel (0) target = $region9
  $region8: #{tpu_custom_call.1} parent=0 // pred_region
    _
  $region9: #{tpu_custom_call.1} parent=0 // pred_fallthru
    _
  // Predicated region
  $region10: #{tpu_custom_call.1} parent=0 // pred_check
    _
  $region11: #{tpu_custom_call.1} parent=0 // pred_check_branch
    %13 = sbr.rel (0) target = $region13
  $region12: #{tpu_custom_call.1} parent=0 // pred_region
    _
  $region13: #{tpu_custom_call.1} parent=0 // pred_fallthru
    _
  %v14 = vld [vmem:[%s0] sm:$0xff]
  %v15 = vld [vmem:[%s0 + $0x8] sm:$0xff]
  %v16 = vld [vmem:[%s0 + $0x10] sm:$0xff]
  %v17 = vld [vmem:[%s0 + $0x18] sm:$0xff]
  %v18 = vld [vmem:[%s0 + $0x20] sm:$0xff]
  %v19 = vld [vmem:[%s0 + $0x28] sm:$0xff]
  %v20 = vld [vmem:[%s0 + $0x30] sm:$0xff]
  %v21 = vld [vmem:[%s0 + $0x38] sm:$0xff]
  %v22 = vld [vmem:[%s0 + $0x40] sm:$0xff]
  %v23 = vld [vmem:[%s0 + $0x48] sm:$0xff]
  %v24 = vld [vmem:[%s0 + $0x50] sm:$0xff]
  %v25 = vld [vmem:[%s0 + $0x58] sm:$0xff]
  %v26 = vld [vmem:[%s0 + $0x60] sm:$0xff]
  %v27 = vld [vmem:[%s0 + $0x68] sm:$0xff]
  %v28 = vld [vmem:[%s0 + $0x70] sm:$0xff]
  %v29 = vld [vmem:[%s0 + $0x78] sm:$0xff]
  %v30 = vld [vmem:[%s2] sm:$0xff]
  %vm31 = vcmask 64512
  %v33 = vsel %vm31, %v14, 0
  %v36 = vsel %vm31, %v15, 0
  %v39 = vsel %vm31, %v16, 0
  %v42 = vsel %vm31, %v17, 0
  %v45 = vsel %vm31, %v18, 0
  %v48 = vsel %vm31, %v19, 0
  %v51 = vsel %vm31, %v20, 0
  %v54 = vsel %vm31, %v21, 0
  %v57 = vsel %vm31, %v22, 0
  %v60 = vsel %vm31, %v23, 0
  %v63 = vsel %vm31, %v24, 0
  %v66 = vsel %vm31, %v25, 0
  %v69 = vsel %vm31, %v26, 0
  %v72 = vsel %vm31, %v27, 0
  %v75 = vsel %vm31, %v28, 0
  %v78 = vsel %vm31, %v29, 0
  %80 = vmatprep.subr.mxu0 0.0
  %81 = vmatpush1.msra.mxu0 %v30
  %82 = vmatprep.subr.mxu0 0.0
  %83 = vmatpush1.msra.mxu0 0.0
  %84 = vmatprep.subr.mxu0 0.0
  %85 = vmatpush1.msra.mxu0 0.0
  %86 = vmatprep.subr.mxu0 0.0
  %87 = vmatpush1.msra.mxu0 0.0
  %88 = vmatprep.subr.mxu0 0.0
  %89 = vmatpush1.msra.mxu0 0.0
  %90 = vmatprep.subr.mxu0 0.0
  %91 = vmatpush1.msra.mxu0 0.0
  %92 = vmatprep.subr.mxu0 0.0
  %93 = vmatpush1.msra.mxu0 0.0
  %94 = vmatprep.subr.mxu0 0.0
  %95 = vmatpush1.msra.mxu0 0.0
  %96 = vmatprep.subr.mxu0 0.0
  %97 = vmatpush1.msra.mxu0 0.0
  %98 = vmatprep.subr.mxu0 0.0
  %99 = vmatpush1.msra.mxu0 0.0
  %100 = vmatprep.subr.mxu0 0.0
  %101 = vmatpush1.msra.mxu0 0.0
  %102 = vmatprep.subr.mxu0 0.0
  %103 = vmatpush1.msra.mxu0 0.0
  %104 = vmatprep.subr.mxu0 0.0
  %105 = vmatpush1.msra.mxu0 0.0
  %106 = vmatprep.subr.mxu0 0.0
  %107 = vmatpush1.msra.mxu0 0.0
  %108 = vmatprep.subr.mxu0 0.0
  %109 = vmatpush1.msra.mxu0 0.0
  %110 = vmatprep.subr.mxu0 0.0
  %111 = vmatpush1.msra.mxu0 0.0
  %112 = vmatprep.subr.mxu0 0.0
  %113 = vmatpush1.msra.mxu0 0.0
  %114 = vmatprep.subr.mxu0 0.0
  %115 = vmatpush1.msra.mxu0 0.0
  %116 = vmatprep.subr.mxu0 0.0
  %117 = vmatpush1.msra.mxu0 0.0
  %118 = vmatprep.subr.mxu0 0.0
  %119 = vmatpush1.msra.mxu0 0.0
  %120 = vmatprep.subr.mxu0 0.0
  %121 = vmatpush1.msra.mxu0 0.0
  %122 = vmatprep.subr.mxu0 0.0
  %123 = vmatpush1.msra.mxu0 0.0
  %124 = vmatprep.subr.mxu0 0.0
  %125 = vmatpush1.msra.mxu0 0.0
  %126 = vmatprep.subr.mxu0 0.0
  %127 = vmatpush1.msra.mxu0 0.0
  %128 = vmatprep.subr.mxu0 0.0
  %129 = vmatpush1.msra.mxu0 0.0
  %130 = vmatprep.subr.mxu0 0.0
  %131 = vmatpush1.msra.mxu0 0.0
  %132 = vmatprep.subr.mxu0 0.0
  %133 = vmatpush1.msra.mxu0 0.0
  %134 = vmatprep.subr.mxu0 0.0
  %135 = vmatpush1.msra.mxu0 0.0
  %136 = vmatprep.subr.mxu0 0.0
  %137 = vmatpush1.msra.mxu0 0.0
  %138 = vmatprep.subr.mxu0 0.0
  %139 = vmatpush1.msra.mxu0 0.0
  %140 = vmatprep.subr.mxu0 0.0
  %141 = vmatpush1.msra.mxu0 0.0
  %142 = vmatprep.subr.mxu0 0.0
  %143 = vmatpush1.msra.mxu0 0.0
  %144 = vmatprep.mubr.f32.mxu0 0.0
  %145 = vmatmul.mubr.f32.gmra.mrb[0].mxu0 %v33
  %v146 = vpop.f32.mrb[0].mxu0
  %v147 = vadd.f32 0.0, %v146
  %v148 = vpop.f32.mrb[0].mxu0
  %149 = vmatprep.mubr.f32.mxu0 0.0
  %150 = vmatmul.mubr.f32.gmra.mrb[0].mxu0 %v36
  %v151 = vpop.f32.mrb[0].mxu0
  %v152 = vadd.f32 0.0, %v151
  %v153 = vpop.f32.mrb[0].mxu0
  %154 = vmatprep.mubr.f32.mxu0 0.0
  %155 = vmatmul.mubr.f32.gmra.mrb[0].mxu0 %v39
  %v156 = vpop.f32.mrb[0].mxu0
  %v157 = vadd.f32 0.0, %v156
  %v158 = vpop.f32.mrb[0].mxu0
  %159 = vmatprep.mubr.f32.mxu0 0.0
  %160 = vmatmul.mubr.f32.gmra.mrb[0].mxu0 %v42
  %v161 = vpop.f32.mrb[0].mxu0
  %v162 = vadd.f32 0.0, %v161
  %v163 = vpop.f32.mrb[0].mxu0
  %164 = vmatprep.mubr.f32.mxu0 0.0
  %165 = vmatmul.mubr.f32.gmra.mrb[0].mxu0 %v45
  %v166 = vpop.f32.mrb[0].mxu0
  %v167 = vadd.f32 0.0, %v166
  %v168 = vpop.f32.mrb[0].mxu0
  %169 = vmatprep.mubr.f32.mxu0 0.0
  %170 = vmatmul.mubr.f32.gmra.mrb[0].mxu0 %v48
  %v171 = vpop.f32.mrb[0].mxu0
  %v172 = vadd.f32 0.0, %v171
  %v173 = vpop.f32.mrb[0].mxu0
  %174 = vmatprep.mubr.f32.mxu0 0.0
  %175 = vmatmul.mubr.f32.gmra.mrb[0].mxu0 %v51
  %v176 = vpop.f32.mrb[0].mxu0
  %v177 = vadd.f32 0.0, %v176
  %v178 = vpop.f32.mrb[0].mxu0
  %179 = vmatprep.mubr.f32.mxu0 0.0
  %180 = vmatmul.mubr.f32.gmra.mrb[0].mxu0 %v54
  %v181 = vpop.f32.mrb[0].mxu0
  %v182 = vadd.f32 0.0, %v181
  %v183 = vpop.f32.mrb[0].mxu0
  %184 = vmatprep.mubr.f32.mxu0 0.0
  %185 = vmatmul.mubr.f32.gmra.mrb[0].mxu0 %v57
  %v186 = vpop.f32.mrb[0].mxu0
  %v187 = vadd.f32 0.0, %v186
  %v188 = vpop.f32.mrb[0].mxu0
  %189 = vmatprep.mubr.f32.mxu0 0.0
  %190 = vmatmul.mubr.f32.gmra.mrb[0].mxu0 %v60
  %v191 = vpop.f32.mrb[0].mxu0
  %v192 = vadd.f32 0.0, %v191
  %v193 = vpop.f32.mrb[0].mxu0
  %194 = vmatprep.mubr.f32.mxu0 0.0
  %195 = vmatmul.mubr.f32.gmra.mrb[0].mxu0 %v63
  %v196 = vpop.f32.mrb[0].mxu0
  %v197 = vadd.f32 0.0, %v196
  %v198 = vpop.f32.mrb[0].mxu0
  %199 = vmatprep.mubr.f32.mxu0 0.0
  %200 = vmatmul.mubr.f32.gmra.mrb[0].mxu0 %v66
  %v201 = vpop.f32.mrb[0].mxu0
  %v202 = vadd.f32 0.0, %v201
  %v203 = vpop.f32.mrb[0].mxu0
  %204 = vmatprep.mubr.f32.mxu0 0.0
  %205 = vmatmul.mubr.f32.gmra.mrb[0].mxu0 %v69
  %v206 = vpop.f32.mrb[0].mxu0
  %v207 = vadd.f32 0.0, %v206
  %v208 = vpop.f32.mrb[0].mxu0
  %209 = vmatprep.mubr.f32.mxu0 0.0
  %210 = vmatmul.mubr.f32.gmra.mrb[0].mxu0 %v72
  %v211 = vpop.f32.mrb[0].mxu0
  %v212 = vadd.f32 0.0, %v211
  %v213 = vpop.f32.mrb[0].mxu0
  %214 = vmatprep.mubr.f32.mxu0 0.0
  %215 = vmatmul.mubr.f32.gmra.mrb[0].mxu0 %v75
  %v216 = vpop.f32.mrb[0].mxu0
  %v217 = vadd.f32 0.0, %v216
  %v218 = vpop.f32.mrb[0].mxu0
  %219 = vmatprep.mubr.f32.mxu0 0.0
  %220 = vmatmul.mubr.f32.gmra.mrb[0].mxu0 %v78
  %v221 = vpop.f32.mrb[0].mxu0
  %v222 = vadd.f32 0.0, %v221
  %v223 = vpop.f32.mrb[0].mxu0
  %224 = vdwg.mxu0
  %v225 = vld [vmem:[%s1] sm:$0xff]
  %v226 = vld [vmem:[%s1 + $0x8] sm:$0xff]
  %v227 = vld [vmem:[%s1 + $0x10] sm:$0xff]
  %v228 = vld [vmem:[%s1 + $0x18] sm:$0xff]
  %v229 = vld [vmem:[%s1 + $0x20] sm:$0xff]
  %v230 = vld [vmem:[%s1 + $0x28] sm:$0xff]
  %v231 = vld [vmem:[%s1 + $0x30] sm:$0xff]
  %v232 = vld [vmem:[%s1 + $0x38] sm:$0xff]
  %v233 = vld [vmem:[%s1 + $0x40] sm:$0xff]
  %v234 = vld [vmem:[%s1 + $0x48] sm:$0xff]
  %v235 = vld [vmem:[%s1 + $0x50] sm:$0xff]
  %v236 = vld [vmem:[%s1 + $0x58] sm:$0xff]
  %v237 = vld [vmem:[%s1 + $0x60] sm:$0xff]
  %v238 = vld [vmem:[%s1 + $0x68] sm:$0xff]
  %v239 = vld [vmem:[%s1 + $0x70] sm:$0xff]
  %v240 = vld [vmem:[%s1 + $0x78] sm:$0xff]
  %242 = vset.pattern.permute.xlu0 0
  %243 = vperm.xlu0 %242, %v225
  %v244 = vpop.permute.xlu0 %243
  %247 = vset.pattern.permute.xlu0 0
  %248 = vperm.xlu0 %247, %v226
  %v249 = vpop.permute.xlu0 %248
  %252 = vset.pattern.permute.xlu0 0
  %253 = vperm.xlu0 %252, %v227
  %v254 = vpop.permute.xlu0 %253
  %257 = vset.pattern.permute.xlu0 0
  %258 = vperm.xlu0 %257, %v228
  %v259 = vpop.permute.xlu0 %258
  %262 = vset.pattern.permute.xlu0 0
  %263 = vperm.xlu0 %262, %v229
  %v264 = vpop.permute.xlu0 %263
  %267 = vset.pattern.permute.xlu0 0
  %268 = vperm.xlu0 %267, %v230
  %v269 = vpop.permute.xlu0 %268
  %272 = vset.pattern.permute.xlu0 0
  %273 = vperm.xlu0 %272, %v231
  %v274 = vpop.permute.xlu0 %273
  %277 = vset.pattern.permute.xlu0 0
  %278 = vperm.xlu0 %277, %v232
  %v279 = vpop.permute.xlu0 %278
  %282 = vset.pattern.permute.xlu0 0
  %283 = vperm.xlu0 %282, %v233
  %v284 = vpop.permute.xlu0 %283
  %287 = vset.pattern.permute.xlu0 0
  %288 = vperm.xlu0 %287, %v234
  %v289 = vpop.permute.xlu0 %288
  %292 = vset.pattern.permute.xlu0 0
  %293 = vperm.xlu0 %292, %v235
  %v294 = vpop.permute.xlu0 %293
  %297 = vset.pattern.permute.xlu0 0
  %298 = vperm.xlu0 %297, %v236
  %v299 = vpop.permute.xlu0 %298
  %302 = vset.pattern.permute.xlu0 0
  %303 = vperm.xlu0 %302, %v237
  %v304 = vpop.permute.xlu0 %303
  %307 = vset.pattern.permute.xlu0 0
  %308 = vperm.xlu0 %307, %v238
  %v309 = vpop.permute.xlu0 %308
  %312 = vset.pattern.permute.xlu0 0
  %313 = vperm.xlu0 %312, %v239
  %v314 = vpop.permute.xlu0 %313
  %317 = vset.pattern.permute.xlu0 0
  %318 = vperm.xlu0 %317, %v240
  %v319 = vpop.permute.xlu0 %318
  %v321 = vmul.f32 %v244, %v147
  %v322 = vmul.f32 %v249, %v152
  %v323 = vmul.f32 %v254, %v157
  %v324 = vmul.f32 %v259, %v162
  %v325 = vmul.f32 %v264, %v167
  %v326 = vmul.f32 %v269, %v172
  %v327 = vmul.f32 %v274, %v177
  %v328 = vmul.f32 %v279, %v182
  %v329 = vmul.f32 %v284, %v187
  %v330 = vmul.f32 %v289, %v192
  %v331 = vmul.f32 %v294, %v197
  %v332 = vmul.f32 %v299, %v202
  %v333 = vmul.f32 %v304, %v207
  %v334 = vmul.f32 %v309, %v212
  %v335 = vmul.f32 %v314, %v217
  %v336 = vmul.f32 %v319, %v222
  %v337 = vpack.c.bf16 %v322, %v321
  %v338 = vpack.c.bf16 %v324, %v323
  %v339 = vpack.c.bf16 %v326, %v325
  %v340 = vpack.c.bf16 %v328, %v327
  %v341 = vpack.c.bf16 %v330, %v329
  %v342 = vpack.c.bf16 %v332, %v331
  %v343 = vpack.c.bf16 %v334, %v333
  %v344 = vpack.c.bf16 %v336, %v335
  %v353 = vunpack.c.l.b16 %v337
  %v354 = vunpack.c.h.b16 %v337
  %v355 = vunpack.c.l.b16 %v338
  %v356 = vunpack.c.h.b16 %v338
  %v357 = vunpack.c.l.b16 %v339
  %v358 = vunpack.c.h.b16 %v339
  %v359 = vunpack.c.l.b16 %v340
  %v360 = vunpack.c.h.b16 %v340
  %v361 = vunpack.c.l.b16 %v341
  %v362 = vunpack.c.h.b16 %v341
  %v363 = vunpack.c.l.b16 %v342
  %v364 = vunpack.c.h.b16 %v342
  %v365 = vunpack.c.l.b16 %v343
  %v366 = vunpack.c.h.b16 %v343
  %v367 = vunpack.c.l.b16 %v344
  %v368 = vunpack.c.h.b16 %v344
  %v369 = vpack.c.b16 %v353, %v353
  %v370 = vpack.c.b16 %v354, %v354
  %v371 = vpack.c.b16 %v355, %v355
  %v372 = vpack.c.b16 %v356, %v356
  %v373 = vpack.c.b16 %v357, %v357
  %v374 = vpack.c.b16 %v358, %v358
  %v375 = vpack.c.b16 %v359, %v359
  %v376 = vpack.c.b16 %v360, %v360
  %v377 = vpack.c.b16 %v361, %v361
  %v378 = vpack.c.b16 %v362, %v362
  %v379 = vpack.c.b16 %v363, %v363
  %v380 = vpack.c.b16 %v364, %v364
  %v381 = vpack.c.b16 %v365, %v365
  %v382 = vpack.c.b16 %v366, %v366
  %v383 = vpack.c.b16 %v367, %v367
  %v384 = vpack.c.b16 %v368, %v368
  %vm401 = vcmask 257024
  %402 = vst.msk [vmem:[%s3] sm:$0xf] %vm401, %v369
  %403 = vst.msk [vmem:[%s3 + $0x4] sm:$0xf] %vm401, %v370
  %404 = vst.msk [vmem:[%s3 + $0x8] sm:$0xf] %vm401, %v371
  %405 = vst.msk [vmem:[%s3 + $0xc] sm:$0xf] %vm401, %v372
  %406 = vst.msk [vmem:[%s3 + $0x10] sm:$0xf] %vm401, %v373
  %407 = vst.msk [vmem:[%s3 + $0x14] sm:$0xf] %vm401, %v374
  %408 = vst.msk [vmem:[%s3 + $0x18] sm:$0xf] %vm401, %v375
  %409 = vst.msk [vmem:[%s3 + $0x1c] sm:$0xf] %vm401, %v376
  %410 = vst.msk [vmem:[%s3 + $0x20] sm:$0xf] %vm401, %v377
  %411 = vst.msk [vmem:[%s3 + $0x24] sm:$0xf] %vm401, %v378
  %412 = vst.msk [vmem:[%s3 + $0x28] sm:$0xf] %vm401, %v379
  %413 = vst.msk [vmem:[%s3 + $0x2c] sm:$0xf] %vm401, %v380
  %414 = vst.msk [vmem:[%s3 + $0x30] sm:$0xf] %vm401, %v381
  %415 = vst.msk [vmem:[%s3 + $0x34] sm:$0xf] %vm401, %v382
  %416 = vst.msk [vmem:[%s3 + $0x38] sm:$0xf] %vm401, %v383
  %417 = vst.msk [vmem:[%s3 + $0x3c] sm:$0xf] %vm401, %v384
  // Predicated region
  $region14: #{tpu_custom_call.1} parent=0 // pred_check
    _
  $region15: #{tpu_custom_call.1} parent=0 // pred_check_branch
    %419 = sbr.rel (0) target = $region17
  $region16: #{tpu_custom_call.1} parent=0 // pred_region
    _
  $region17: #{tpu_custom_call.1} parent=0 // pred_fallthru
    _
  // Predicated region
  $region18: #{tpu_custom_call.1} parent=0 // pred_check
    _
  $region19: #{tpu_custom_call.1} parent=0 // pred_check_branch
    %421 = sbr.rel (0) target = $region21
  $region20: #{tpu_custom_call.1} parent=0 // pred_region
    _
  $region21: #{tpu_custom_call.1} parent=0 // pred_fallthru
    _

</llo_original>
